<compile_context>
chip_gen: v7x
topology: tpu7x:2x2x1
jax: 0.10.0
libtpu: 0.0.40
codegen_flags: <defaults>
</compile_context>

<pallas_src>
import functools

import jax
import jax.numpy as jnp
from jax.experimental import pallas as pl
from jax.experimental.pallas import tpu as pltpu

MCONF = {
    'is3D': False,
    'inputDim': 2,                       # [pDiv / scale, occupancy]
    'normalizeInput': True,
    'normalizeInputChan': 'UDiv',
    'normalizeInputThreshold': 1e-5,
    'inputChannels': {'pDiv': True, 'UDiv': False, 'div': False},
}


def _phiflownet_kernel(inp_ref, scale_ref, x_ref, velmask_ref, vel_ref,
                       *, threshold):
    """One grid step == one (Bt, 4, H, W) batch sub-block.

    inp_ref     : VMEM (Bt, 4, H, W)      channels: 0=pDiv, 1=Ux, 2=Uy, 3=flags
    scale_ref   : SMEM (Bt, 1)            per-batch _ScaleNet scale
    x_ref       : VMEM (Bt, 2, H, W)      network input [pDiv/scale, occupancy]
    velmask_ref : VMEM (Bt, 2, H+1, W+1)  staggered vel_mask (written in-kernel)
    vel_ref     : VMEM (Bt, 2, H+1, W+1)  staggered velocity * vel_mask
    """
    bt, _, h, w = inp_ref.shape
    n = 2.0 * h * w

    # Boundary masks for the staggered shift: zero column 0 of mask_x and
    # row 0 of mask_y.  Narrow (1, W)/(H, 1) iotas, hoisted out of the batch
    # loop (JAX does not CSE broadcast_in_dim).
    colmask = (jax.lax.broadcasted_iota(jnp.int32, (1, w), 1) >= 1
               ).astype(jnp.float32)
    rowmask = (jax.lax.broadcasted_iota(jnp.int32, (h, 1), 0) >= 1
               ).astype(jnp.float32)

    for b in range(bt):                    # static unroll over the sub-block
        pdiv = inp_ref[b, 0]               # (H, W)
        uv = inp_ref[b, 1:3]               # (2, H, W) == UDiv, loaded once
        flags = inp_ref[b, 3]              # (H, W)

        # TODO(synk): setWallBcs(UDiv, flags) is an external helper not
        # included in the provided module; treated as identity here.

        # ---- _ScaleNet: unbiased std over flattened UDiv, clamped below ----
        # Two-pass mean/var kept for numerical stability (torch.std ddof=1);
        # one stacked reduction per pass instead of separate u/v sums.
        mean = jnp.sum(uv) / n
        var = jnp.sum((uv - mean) ** 2) / (n - 1.0)
        s = jnp.maximum(jnp.sqrt(var), threshold)      # clamp(std, thr, inf)
        scale_ref[b, 0] = s                # scalar SMEM write (no lane bcast)

        # ---- network input x: [pDiv / scale, flagsToOccupancy(flags)] ------
        inv_s = 1.0 / s                    # one scalar reciprocal, then vmuls
        x_ref[b, 0] = pdiv * inv_s
        # flagsToOccupancy: fluid flag (1) -> 0, obstacle flag (2) -> 1.
        # TODO(synk): other mantaflow flag values (empty=4, inflow/outflow)
        # are not handled — the module itself assumes flags in {1, 2}.
        x_ref[b, 1] = jnp.where(flags == 2.0, 1.0, 0.0).astype(x_ref.dtype)

        # ---- staggered vel_mask (flags_big * flags_big_next products) ------
        g = 2.0 - flags
        g_xm1 = pltpu.roll(g, shift=1, axis=1) * colmask   # g[y, x-1], col0=0
        g_ym1 = pltpu.roll(g, shift=1, axis=0) * rowmask   # g[y-1, x], row0=0
        mask_x = g * g_xm1                 # vel_mask_x[y, x] = g[y,x]*g[y,x-1]
        mask_y = g * g_ym1                 # vel_mask_y[y, x] = g[y,x]*g[y-1,x]

        # Dense interior stores (unmasked full-lane vst when W % 128 == 0).
        velmask_ref[b, 0, :h, :w] = mask_x
        velmask_ref[b, 1, :h, :w] = mask_y

        # TODO(synk): UNet + phiflow fluid.make_incompressible_with_network
        # (pressure projection) are external dependencies not reproducible
        # here; the returned velocity is the staggered input velocity with
        # the final `velocity *= vel_mask` applied.
        vel_ref[b, 0, :h, :w] = uv[0] * mask_x
        vel_ref[b, 1, :h, :w] = uv[1] * mask_y

    # Staggered zero boundary (row H and column W), written in-kernel so the
    # wrapper needs no jnp.pad pass over the big outputs.
    zrow = jnp.zeros((bt, 2, 1, w + 1), dtype=velmask_ref.dtype)
    zcol = jnp.zeros((bt, 2, h, 1), dtype=velmask_ref.dtype)
    velmask_ref[:, :, h:, :] = zrow
    velmask_ref[:, :, :h, w:] = zcol
    vel_ref[:, :, h:, :] = zrow
    vel_ref[:, :, :h, w:] = zcol


def _pick_bt(batch, per_batch_bytes, target_bytes=4 << 20, max_bt=8):
    """Largest divisor of `batch` (<= max_bt) whose per-step block fits target."""
    best = 1
    for cand in range(2, min(batch, max_bt) + 1):
        if batch % cand == 0 and cand * per_batch_bytes <= target_bytes:
            best = cand
    return best


def phiflownet_forward(input_, mconf=MCONF):
    """input_: (B, 4, 1, H, W) float32 [pDiv, Ux, Uy, flags].

    Returns (x, velocity, vel_mask, scale):
      x        (B, 2, H, W)
      velocity (B, 2, H+1, W+1) staggered (== UDiv_big * vel_mask, see TODOs)
      vel_mask (B, 2, H+1, W+1) staggered
      scale    (B, 1, 1, 1, 1)  _ScaleNet(UDiv)
    """
    B, C, D, H, W = input_.shape
    assert C == 4 and D == 1
    assert not mconf['is3D'] and mconf['inputDim'] == 2
    assert mconf['normalizeInput'] and mconf['normalizeInputChan'] == 'UDiv'
    assert (mconf['inputChannels']['pDiv']
            and not mconf['inputChannels']['UDiv']
            and not mconf['inputChannels']['div'])

    inp2d = input_[:, :, 0].astype(jnp.float32)       # (B, 4, H, W)
    thr = float(mconf['normalizeInputThreshold'])

    # Per-batch VMEM footprint of one grid step (input + 3 VMEM output blocks).
    per_batch_bytes = 4 * (4 * H * W + 2 * H * W + 2 * 2 * (H + 1) * (W + 1))
    Bt = _pick_bt(B, per_batch_bytes)
    nb = B // Bt

    # Pipeline double-buffers each block (that *is* the x2); cap at 48 MiB so
    # v7x (64 MiB physical VMEM) keeps headroom for Mosaic scratch; floor is
    # the 32 MiB scoped default.
    # TODO(synk): grids whose double-buffered per-batch working set exceeds
    # ~48 MiB (e.g. B == 1 at >= 1024^2) need an H-tiling grid axis with a
    # 1-row halo for mask_y; that also enables a v7x megacore split when B==1.
    step_bytes = Bt * per_batch_bytes
    vmem_limit = int(min(48 << 20, max(32 << 20, 2 * step_bytes + (2 << 20))))

    kernel = functools.partial(_phiflownet_kernel, threshold=thr)

    out_shapes = (
        jax.ShapeDtypeStruct((B, 1), jnp.float32),                # scale (SMEM)
        jax.ShapeDtypeStruct((B, 2, H, W), jnp.float32),          # network x
        jax.ShapeDtypeStruct((B, 2, H + 1, W + 1), jnp.float32),  # vel_mask
        jax.ShapeDtypeStruct((B, 2, H + 1, W + 1), jnp.float32),  # velocity*mask
    )

    # Block shapes keep the full (H, W) / (H+1, W+1) trailing dims, so they are
    # exempt from the (8, 128) divisibility rule for any H, W.
    # TODO(synk): when W % 128 != 0 the interior stores are masked vst.msk; for
    # large production grids keep W a multiple of 128 (or fold a lane pad into
    # the boundary-zero logic).  Padding the 16-wide test grid 8x would cost
    # more HBM traffic than it saves, so it is not done here.
    # (Pipeline depth left at the default 2; on v6e a pl.Buffered(3) input spec
    # is a cheap knob if traces show exposed DMA between the small steps.)
    grid_spec = pltpu.PrefetchScalarGridSpec(
        num_scalar_prefetch=0,
        grid=(nb,),
        in_specs=[pl.BlockSpec((Bt, 4, H, W), lambda i: (i, 0, 0, 0))],
        out_specs=[
            pl.BlockSpec((Bt, 1), lambda i: (i, 0),
                         memory_space=pltpu.MemorySpace.SMEM),
            pl.BlockSpec((Bt, 2, H, W), lambda i: (i, 0, 0, 0)),
            pl.BlockSpec((Bt, 2, H + 1, W + 1), lambda i: (i, 0, 0, 0)),
            pl.BlockSpec((Bt, 2, H + 1, W + 1), lambda i: (i, 0, 0, 0)),
        ],
    )

    scale_b, x, vel_mask, velocity = pl.pallas_call(
        kernel,
        out_shape=out_shapes,
        grid_spec=grid_spec,
        compiler_params=pltpu.CompilerParams(
            dimension_semantics=("parallel",),
            vmem_limit_bytes=vmem_limit),
    )(inp2d)

    scale = scale_b.reshape(B, 1, 1, 1, 1)
    return x, velocity, vel_mask, scale


if __name__ == "__main__":
    B, H, W = 2, 16, 16
    key = jax.random.PRNGKey(0)
    k_p, k_u, k_v, k_f = jax.random.split(key, 4)

    pdiv = jax.random.normal(k_p, (B, H, W), dtype=jnp.float32)
    ux = jax.random.normal(k_u, (B, H, W), dtype=jnp.float32)
    uy = jax.random.normal(k_v, (B, H, W), dtype=jnp.float32)
    # mantaflow-style flags: fluid = 1, obstacle = 2
    flags = 1.0 + (jax.random.uniform(k_f, (B, H, W)) > 0.8).astype(jnp.float32)

    input_ = jnp.stack([pdiv, ux, uy, flags], axis=1)[:, :, None]  # (B,4,1,H,W)

    x, velocity, vel_mask, scale = phiflownet_forward(input_)
    jax.block_until_ready((x, velocity, vel_mask, scale))

    # ---- reference checks against plain JAX --------------------------------
    # _ScaleNet scale
    udiv_flat = input_[:, 1:3, 0].reshape(B, -1)
    ref_scale = jnp.maximum(jnp.std(udiv_flat, axis=1, ddof=1),
                            MCONF['normalizeInputThreshold'])
    assert jnp.allclose(scale[:, 0, 0, 0, 0], ref_scale, rtol=1e-5, atol=1e-6)

    # staggered vel_mask
    g = 2.0 - flags
    ref_mask = jnp.zeros((B, 2, H + 1, W + 1), jnp.float32)
    ref_mask = ref_mask.at[:, 0, :H, 1:W].set(g[:, :, 1:] * g[:, :, :-1])
    ref_mask = ref_mask.at[:, 1, 1:H, :W].set(g[:, 1:, :] * g[:, :-1, :])
    assert jnp.allclose(vel_mask, ref_mask)

    # velocity * vel_mask
    ref_vel = jnp.zeros((B, 2, H + 1, W + 1), jnp.float32)
    ref_vel = ref_vel.at[:, 0, :H, :W].set(ux)
    ref_vel = ref_vel.at[:, 1, :H, :W].set(uy)
    ref_vel = ref_vel * ref_mask
    assert jnp.allclose(velocity, ref_vel)

    # network input x
    ref_x0 = pdiv / ref_scale[:, None, None]
    assert jnp.allclose(x[:, 0], ref_x0, rtol=1e-4, atol=1e-5)
    assert jnp.allclose(x[:, 1], (flags == 2.0).astype(jnp.float32))

    print("KERNEL_OK")
</pallas_src>

<mosaic_0001>
module attributes {stable_mosaic.version = 11 : i64} {
  func.func @_phiflownet_kernel(%arg0: i32, %arg1: memref<2x4x16x16xf32, #tpu.memory_space<vmem>>, %arg2: memref<2x1xf32, #tpu.memory_space<smem>>, %arg3: memref<2x2x16x16xf32, #tpu.memory_space<vmem>>, %arg4: memref<2x2x17x17xf32, #tpu.memory_space<vmem>>, %arg5: memref<2x2x17x17xf32, #tpu.memory_space<vmem>>) attributes {dimension_semantics = [#tpu.dimension_semantics<parallel>], iteration_bounds = array<i64: 1>, scalar_prefetch = 0 : i64, scratch_operands = 0 : i64, tpu.core_type = #tpu.core_type<tc>, window_params = [{transform_indices = @transform_0, window_bounds = array<i64: 2, 4, 16, 16>}, {transform_indices = @transform_1, window_bounds = array<i64: 2, 1>}, {transform_indices = @transform_2, window_bounds = array<i64: 2, 2, 16, 16>}, {transform_indices = @transform_3, window_bounds = array<i64: 2, 2, 17, 17>}, {transform_indices = @transform_4, window_bounds = array<i64: 2, 2, 17, 17>}]} {
    %0 = tpu.iota {dimensions = array<i32: 1>} : vector<1x16xi32>
    %c1_i32 = arith.constant 1 : i32
    %1 = vector.broadcast %c1_i32 : i32 to vector<1x16xi32>
    %2 = arith.cmpi sge, %0, %1 : vector<1x16xi32>
    %3 = arith.extui %2 : vector<1x16xi1> to vector<1x16xi32>
    %4 = arith.sitofp %3 : vector<1x16xi32> to vector<1x16xf32>
    %5 = tpu.iota {dimensions = array<i32: 0>} : vector<16x1xi32>
    %c1_i32_0 = arith.constant 1 : i32
    %6 = vector.broadcast %c1_i32_0 : i32 to vector<16x1xi32>
    %7 = arith.cmpi sge, %5, %6 : vector<16x1xi32>
    %8 = arith.extui %7 : vector<16x1xi1> to vector<16x1xi32>
    %9 = arith.sitofp %8 : vector<16x1xi32> to vector<16x1xf32>
    %c0 = arith.constant 0 : index
    %c0_1 = arith.constant 0 : index
    %c0_2 = arith.constant 0 : index
    %c0_3 = arith.constant 0 : index
    %10 = vector.load %arg1[%c0, %c0_1, %c0_2, %c0_3] : memref<2x4x16x16xf32, #tpu.memory_space<vmem>>, vector<1x1x16x16xf32>
    %11 = vector.shape_cast %10 : vector<1x1x16x16xf32> to vector<16x16xf32>
    %c0_4 = arith.constant 0 : index
    %c1 = arith.constant 1 : index
    %c0_5 = arith.constant 0 : index
    %c0_6 = arith.constant 0 : index
    %12 = vector.load %arg1[%c0_4, %c1, %c0_5, %c0_6] : memref<2x4x16x16xf32, #tpu.memory_space<vmem>>, vector<1x2x16x16xf32>
    %13 = vector.shape_cast %12 : vector<1x2x16x16xf32> to vector<2x16x16xf32>
    %c0_7 = arith.constant 0 : index
    %c3 = arith.constant 3 : index
    %c0_8 = arith.constant 0 : index
    %c0_9 = arith.constant 0 : index
    %14 = vector.load %arg1[%c0_7, %c3, %c0_8, %c0_9] : memref<2x4x16x16xf32, #tpu.memory_space<vmem>>, vector<1x1x16x16xf32>
    %15 = vector.shape_cast %14 : vector<1x1x16x16xf32> to vector<16x16xf32>
    %16 = vector.shape_cast %13 : vector<2x16x16xf32> to vector<1x2x16x16xf32>
    %cst = arith.constant dense<0.000000e+00> : vector<1xf32>
    %17 = vector.multi_reduction <add>, %16, %cst [1, 2, 3] : vector<1x2x16x16xf32> to vector<1xf32>
    %18 = vector.shape_cast %17 : vector<1xf32> to vector<1x1x1x1xf32>
    %19 = vector.extract %18[0, 0, 0, 0] : f32 from vector<1x1x1x1xf32>
    %cst_10 = arith.constant 5.120000e+02 : f32
    %20 = arith.divf %19, %cst_10 : f32
    %21 = vector.broadcast %20 : f32 to vector<2x16x16xf32>
    %22 = arith.subf %13, %21 : vector<2x16x16xf32>
    %23 = arith.mulf %22, %22 : vector<2x16x16xf32>
    %24 = vector.shape_cast %23 : vector<2x16x16xf32> to vector<1x2x16x16xf32>
    %cst_11 = arith.constant dense<0.000000e+00> : vector<1xf32>
    %25 = vector.multi_reduction <add>, %24, %cst_11 [1, 2, 3] : vector<1x2x16x16xf32> to vector<1xf32>
    %26 = vector.shape_cast %25 : vector<1xf32> to vector<1x1x1x1xf32>
    %27 = vector.extract %26[0, 0, 0, 0] : f32 from vector<1x1x1x1xf32>
    %cst_12 = arith.constant 5.110000e+02 : f32
    %28 = arith.divf %27, %cst_12 : f32
    %29 = math.sqrt %28 : f32
    %cst_13 = arith.constant 9.99999974E-6 : f32
    %30 = arith.maximumf %29, %cst_13 : f32
    %c0_14 = arith.constant 0 : index
    %c0_15 = arith.constant 0 : index
    %31 = memref.load %arg2[%c0_14, %c0_15] : memref<2x1xf32, #tpu.memory_space<smem>>
    memref.store %30, %arg2[%c0_14, %c0_15] : memref<2x1xf32, #tpu.memory_space<smem>>
    %cst_16 = arith.constant 1.000000e+00 : f32
    %32 = arith.divf %cst_16, %30 : f32
    %33 = vector.broadcast %32 : f32 to vector<16x16xf32>
    %34 = arith.mulf %11, %33 : vector<16x16xf32>
    %c0_17 = arith.constant 0 : index
    %c0_18 = arith.constant 0 : index
    %c0_19 = arith.constant 0 : index
    %c0_20 = arith.constant 0 : index
    %35 = vector.load %arg3[%c0_17, %c0_18, %c0_19, %c0_20] : memref<2x2x16x16xf32, #tpu.memory_space<vmem>>, vector<1x1x16x16xf32>
    %36 = vector.shape_cast %35 : vector<1x1x16x16xf32> to vector<16x16xf32>
    %37 = vector.shape_cast %34 : vector<16x16xf32> to vector<1x1x16x16xf32>
    tpu.vector_store %arg3[%c0_17, %c0_18, %c0_19, %c0_20], %37 {strides = array<i32>} : memref<2x2x16x16xf32, #tpu.memory_space<vmem>>, vector<1x1x16x16xf32>,
    %cst_21 = arith.constant 2.000000e+00 : f32
    %38 = vector.broadcast %cst_21 : f32 to vector<16x16xf32>
    %39 = arith.cmpf oeq, %15, %38 : vector<16x16xf32>
    %cst_22 = arith.constant 1.000000e+00 : f32
    %cst_23 = arith.constant 0.000000e+00 : f32
    %40 = vector.broadcast %cst_22 : f32 to vector<16x16xf32>
    %41 = vector.broadcast %cst_23 : f32 to vector<16x16xf32>
    %42 = arith.select %39, %40, %41 : vector<16x16xi1>, vector<16x16xf32>
    %c0_24 = arith.constant 0 : index
    %c1_25 = arith.constant 1 : index
    %c0_26 = arith.constant 0 : index
    %c0_27 = arith.constant 0 : index
    %43 = vector.load %arg3[%c0_24, %c1_25, %c0_26, %c0_27] : memref<2x2x16x16xf32, #tpu.memory_space<vmem>>, vector<1x1x16x16xf32>
    %44 = vector.shape_cast %43 : vector<1x1x16x16xf32> to vector<16x16xf32>
    %45 = vector.shape_cast %42 : vector<16x16xf32> to vector<1x1x16x16xf32>
    tpu.vector_store %arg3[%c0_24, %c1_25, %c0_26, %c0_27], %45 {strides = array<i32>} : memref<2x2x16x16xf32, #tpu.memory_space<vmem>>, vector<1x1x16x16xf32>,
    %cst_28 = arith.constant 2.000000e+00 : f32
    %46 = vector.broadcast %cst_28 : f32 to vector<16x16xf32>
    %47 = arith.subf %46, %15 : vector<16x16xf32>
    %c1_i32_29 = arith.constant 1 : i32
    %48 = tpu.dynamic_rotate %47 by %c1_i32_29 dim 1 : vector<16x16xf32>, i32 -> vector<16x16xf32>
    %49 = vector.broadcast %4 : vector<1x16xf32> to vector<16x16xf32>
    %50 = arith.mulf %48, %49 : vector<16x16xf32>
    %c1_i32_30 = arith.constant 1 : i32
    %51 = tpu.dynamic_rotate %47 by %c1_i32_30 dim 0 : vector<16x16xf32>, i32 -> vector<16x16xf32>
    %52 = vector.broadcast %9 : vector<16x1xf32> to vector<16x16xf32>
    %53 = arith.mulf %51, %52 : vector<16x16xf32>
    %54 = arith.mulf %47, %50 : vector<16x16xf32>
    %55 = arith.mulf %47, %53 : vector<16x16xf32>
    %c0_31 = arith.constant 0 : index
    %c0_32 = arith.constant 0 : index
    %c0_33 = arith.constant 0 : index
    %c0_34 = arith.constant 0 : index
    %56 = vector.load %arg4[%c0_31, %c0_32, %c0_33, %c0_34] : memref<2x2x17x17xf32, #tpu.memory_space<vmem>>, vector<1x1x16x16xf32>
    %57 = vector.shape_cast %56 : vector<1x1x16x16xf32> to vector<16x16xf32>
    %58 = vector.shape_cast %54 : vector<16x16xf32> to vector<1x1x16x16xf32>
    tpu.vector_store %arg4[%c0_31, %c0_32, %c0_33, %c0_34], %58 {strides = array<i32>} : memref<2x2x17x17xf32, #tpu.memory_space<vmem>>, vector<1x1x16x16xf32>,
    %c0_35 = arith.constant 0 : index
    %c1_36 = arith.constant 1 : index
    %c0_37 = arith.constant 0 : index
    %c0_38 = arith.constant 0 : index
    %59 = vector.load %arg4[%c0_35, %c1_36, %c0_37, %c0_38] : memref<2x2x17x17xf32, #tpu.memory_space<vmem>>, vector<1x1x16x16xf32>
    %60 = vector.shape_cast %59 : vector<1x1x16x16xf32> to vector<16x16xf32>
    %61 = vector.shape_cast %55 : vector<16x16xf32> to vector<1x1x16x16xf32>
    tpu.vector_store %arg4[%c0_35, %c1_36, %c0_37, %c0_38], %61 {strides = array<i32>} : memref<2x2x17x17xf32, #tpu.memory_space<vmem>>, vector<1x1x16x16xf32>,
    %62 = vector.extract_strided_slice %13 {offsets = [0, 0, 0], sizes = [1, 16, 16], strides = [1, 1, 1]} : vector<2x16x16xf32> to vector<1x16x16xf32>
    %63 = vector.shape_cast %62 : vector<1x16x16xf32> to vector<16x16xf32>
    %64 = arith.mulf %63, %54 : vector<16x16xf32>
    %c0_39 = arith.constant 0 : index
    %c0_40 = arith.constant 0 : index
    %c0_41 = arith.constant 0 : index
    %c0_42 = arith.constant 0 : index
    %65 = vector.load %arg5[%c0_39, %c0_40, %c0_41, %c0_42] : memref<2x2x17x17xf32, #tpu.memory_space<vmem>>, vector<1x1x16x16xf32>
    %66 = vector.shape_cast %65 : vector<1x1x16x16xf32> to vector<16x16xf32>
    %67 = vector.shape_cast %64 : vector<16x16xf32> to vector<1x1x16x16xf32>
    tpu.vector_store %arg5[%c0_39, %c0_40, %c0_41, %c0_42], %67 {strides = array<i32>} : memref<2x2x17x17xf32, #tpu.memory_space<vmem>>, vector<1x1x16x16xf32>,
    %68 = vector.extract_strided_slice %13 {offsets = [1, 0, 0], sizes = [1, 16, 16], strides = [1, 1, 1]} : vector<2x16x16xf32> to vector<1x16x16xf32>
    %69 = vector.shape_cast %68 : vector<1x16x16xf32> to vector<16x16xf32>
    %70 = arith.mulf %69, %55 : vector<16x16xf32>
    %c0_43 = arith.constant 0 : index
    %c1_44 = arith.constant 1 : index
    %c0_45 = arith.constant 0 : index
    %c0_46 = arith.constant 0 : index
    %71 = vector.load %arg5[%c0_43, %c1_44, %c0_45, %c0_46] : memref<2x2x17x17xf32, #tpu.memory_space<vmem>>, vector<1x1x16x16xf32>
    %72 = vector.shape_cast %71 : vector<1x1x16x16xf32> to vector<16x16xf32>
    %73 = vector.shape_cast %70 : vector<16x16xf32> to vector<1x1x16x16xf32>
    tpu.vector_store %arg5[%c0_43, %c1_44, %c0_45, %c0_46], %73 {strides = array<i32>} : memref<2x2x17x17xf32, #tpu.memory_space<vmem>>, vector<1x1x16x16xf32>,
    %c1_47 = arith.constant 1 : index
    %c0_48 = arith.constant 0 : index
    %c0_49 = arith.constant 0 : index
    %c0_50 = arith.constant 0 : index
    %74 = vector.load %arg1[%c1_47, %c0_48, %c0_49, %c0_50] : memref<2x4x16x16xf32, #tpu.memory_space<vmem>>, vector<1x1x16x16xf32>
    %75 = vector.shape_cast %74 : vector<1x1x16x16xf32> to vector<16x16xf32>
    %c1_51 = arith.constant 1 : index
    %c1_52 = arith.constant 1 : index
    %c0_53 = arith.constant 0 : index
    %c0_54 = arith.constant 0 : index
    %76 = vector.load %arg1[%c1_51, %c1_52, %c0_53, %c0_54] : memref<2x4x16x16xf32, #tpu.memory_space<vmem>>, vector<1x2x16x16xf32>
    %77 = vector.shape_cast %76 : vector<1x2x16x16xf32> to vector<2x16x16xf32>
    %c1_55 = arith.constant 1 : index
    %c3_56 = arith.constant 3 : index
    %c0_57 = arith.constant 0 : index
    %c0_58 = arith.constant 0 : index
    %78 = vector.load %arg1[%c1_55, %c3_56, %c0_57, %c0_58] : memref<2x4x16x16xf32, #tpu.memory_space<vmem>>, vector<1x1x16x16xf32>
    %79 = vector.shape_cast %78 : vector<1x1x16x16xf32> to vector<16x16xf32>
    %80 = vector.shape_cast %77 : vector<2x16x16xf32> to vector<1x2x16x16xf32>
    %cst_59 = arith.constant dense<0.000000e+00> : vector<1xf32>
    %81 = vector.multi_reduction <add>, %80, %cst_59 [1, 2, 3] : vector<1x2x16x16xf32> to vector<1xf32>
    %82 = vector.shape_cast %81 : vector<1xf32> to vector<1x1x1x1xf32>
    %83 = vector.extract %82[0, 0, 0, 0] : f32 from vector<1x1x1x1xf32>
    %cst_60 = arith.constant 5.120000e+02 : f32
    %84 = arith.divf %83, %cst_60 : f32
    %85 = vector.broadcast %84 : f32 to vector<2x16x16xf32>
    %86 = arith.subf %77, %85 : vector<2x16x16xf32>
    %87 = arith.mulf %86, %86 : vector<2x16x16xf32>
    %88 = vector.shape_cast %87 : vector<2x16x16xf32> to vector<1x2x16x16xf32>
    %cst_61 = arith.constant dense<0.000000e+00> : vector<1xf32>
    %89 = vector.multi_reduction <add>, %88, %cst_61 [1, 2, 3] : vector<1x2x16x16xf32> to vector<1xf32>
    %90 = vector.shape_cast %89 : vector<1xf32> to vector<1x1x1x1xf32>
    %91 = vector.extract %90[0, 0, 0, 0] : f32 from vector<1x1x1x1xf32>
    %cst_62 = arith.constant 5.110000e+02 : f32
    %92 = arith.divf %91, %cst_62 : f32
    %93 = math.sqrt %92 : f32
    %cst_63 = arith.constant 9.99999974E-6 : f32
    %94 = arith.maximumf %93, %cst_63 : f32
    %c1_64 = arith.constant 1 : index
    %c0_65 = arith.constant 0 : index
    %95 = memref.load %arg2[%c1_64, %c0_65] : memref<2x1xf32, #tpu.memory_space<smem>>
    memref.store %94, %arg2[%c1_64, %c0_65] : memref<2x1xf32, #tpu.memory_space<smem>>
    %cst_66 = arith.constant 1.000000e+00 : f32
    %96 = arith.divf %cst_66, %94 : f32
    %97 = vector.broadcast %96 : f32 to vector<16x16xf32>
    %98 = arith.mulf %75, %97 : vector<16x16xf32>
    %c1_67 = arith.constant 1 : index
    %c0_68 = arith.constant 0 : index
    %c0_69 = arith.constant 0 : index
    %c0_70 = arith.constant 0 : index
    %99 = vector.load %arg3[%c1_67, %c0_68, %c0_69, %c0_70] : memref<2x2x16x16xf32, #tpu.memory_space<vmem>>, vector<1x1x16x16xf32>
    %100 = vector.shape_cast %99 : vector<1x1x16x16xf32> to vector<16x16xf32>
    %101 = vector.shape_cast %98 : vector<16x16xf32> to vector<1x1x16x16xf32>
    tpu.vector_store %arg3[%c1_67, %c0_68, %c0_69, %c0_70], %101 {strides = array<i32>} : memref<2x2x16x16xf32, #tpu.memory_space<vmem>>, vector<1x1x16x16xf32>,
    %cst_71 = arith.constant 2.000000e+00 : f32
    %102 = vector.broadcast %cst_71 : f32 to vector<16x16xf32>
    %103 = arith.cmpf oeq, %79, %102 : vector<16x16xf32>
    %cst_72 = arith.constant 1.000000e+00 : f32
    %cst_73 = arith.constant 0.000000e+00 : f32
    %104 = vector.broadcast %cst_72 : f32 to vector<16x16xf32>
    %105 = vector.broadcast %cst_73 : f32 to vector<16x16xf32>
    %106 = arith.select %103, %104, %105 : vector<16x16xi1>, vector<16x16xf32>
    %c1_74 = arith.constant 1 : index
    %c1_75 = arith.constant 1 : index
    %c0_76 = arith.constant 0 : index
    %c0_77 = arith.constant 0 : index
    %107 = vector.load %arg3[%c1_74, %c1_75, %c0_76, %c0_77] : memref<2x2x16x16xf32, #tpu.memory_space<vmem>>, vector<1x1x16x16xf32>
    %108 = vector.shape_cast %107 : vector<1x1x16x16xf32> to vector<16x16xf32>
    %109 = vector.shape_cast %106 : vector<16x16xf32> to vector<1x1x16x16xf32>
    tpu.vector_store %arg3[%c1_74, %c1_75, %c0_76, %c0_77], %109 {strides = array<i32>} : memref<2x2x16x16xf32, #tpu.memory_space<vmem>>, vector<1x1x16x16xf32>,
    %cst_78 = arith.constant 2.000000e+00 : f32
    %110 = vector.broadcast %cst_78 : f32 to vector<16x16xf32>
    %111 = arith.subf %110, %79 : vector<16x16xf32>
    %c1_i32_79 = arith.constant 1 : i32
    %112 = tpu.dynamic_rotate %111 by %c1_i32_79 dim 1 : vector<16x16xf32>, i32 -> vector<16x16xf32>
    %113 = vector.broadcast %4 : vector<1x16xf32> to vector<16x16xf32>
    %114 = arith.mulf %112, %113 : vector<16x16xf32>
    %c1_i32_80 = arith.constant 1 : i32
    %115 = tpu.dynamic_rotate %111 by %c1_i32_80 dim 0 : vector<16x16xf32>, i32 -> vector<16x16xf32>
    %116 = vector.broadcast %9 : vector<16x1xf32> to vector<16x16xf32>
    %117 = arith.mulf %115, %116 : vector<16x16xf32>
    %118 = arith.mulf %111, %114 : vector<16x16xf32>
    %119 = arith.mulf %111, %117 : vector<16x16xf32>
    %c1_81 = arith.constant 1 : index
    %c0_82 = arith.constant 0 : index
    %c0_83 = arith.constant 0 : index
    %c0_84 = arith.constant 0 : index
    %120 = vector.load %arg4[%c1_81, %c0_82, %c0_83, %c0_84] : memref<2x2x17x17xf32, #tpu.memory_space<vmem>>, vector<1x1x16x16xf32>
    %121 = vector.shape_cast %120 : vector<1x1x16x16xf32> to vector<16x16xf32>
    %122 = vector.shape_cast %118 : vector<16x16xf32> to vector<1x1x16x16xf32>
    tpu.vector_store %arg4[%c1_81, %c0_82, %c0_83, %c0_84], %122 {strides = array<i32>} : memref<2x2x17x17xf32, #tpu.memory_space<vmem>>, vector<1x1x16x16xf32>,
    %c1_85 = arith.constant 1 : index
    %c1_86 = arith.constant 1 : index
    %c0_87 = arith.constant 0 : index
    %c0_88 = arith.constant 0 : index
    %123 = vector.load %arg4[%c1_85, %c1_86, %c0_87, %c0_88] : memref<2x2x17x17xf32, #tpu.memory_space<vmem>>, vector<1x1x16x16xf32>
    %124 = vector.shape_cast %123 : vector<1x1x16x16xf32> to vector<16x16xf32>
    %125 = vector.shape_cast %119 : vector<16x16xf32> to vector<1x1x16x16xf32>
    tpu.vector_store %arg4[%c1_85, %c1_86, %c0_87, %c0_88], %125 {strides = array<i32>} : memref<2x2x17x17xf32, #tpu.memory_space<vmem>>, vector<1x1x16x16xf32>,
    %126 = vector.extract_strided_slice %77 {offsets = [0, 0, 0], sizes = [1, 16, 16], strides = [1, 1, 1]} : vector<2x16x16xf32> to vector<1x16x16xf32>
    %127 = vector.shape_cast %126 : vector<1x16x16xf32> to vector<16x16xf32>
    %128 = arith.mulf %127, %118 : vector<16x16xf32>
    %c1_89 = arith.constant 1 : index
    %c0_90 = arith.constant 0 : index
    %c0_91 = arith.constant 0 : index
    %c0_92 = arith.constant 0 : index
    %129 = vector.load %arg5[%c1_89, %c0_90, %c0_91, %c0_92] : memref<2x2x17x17xf32, #tpu.memory_space<vmem>>, vector<1x1x16x16xf32>
    %130 = vector.shape_cast %129 : vector<1x1x16x16xf32> to vector<16x16xf32>
    %131 = vector.shape_cast %128 : vector<16x16xf32> to vector<1x1x16x16xf32>
    tpu.vector_store %arg5[%c1_89, %c0_90, %c0_91, %c0_92], %131 {strides = array<i32>} : memref<2x2x17x17xf32, #tpu.memory_space<vmem>>, vector<1x1x16x16xf32>,
    %132 = vector.extract_strided_slice %77 {offsets = [1, 0, 0], sizes = [1, 16, 16], strides = [1, 1, 1]} : vector<2x16x16xf32> to vector<1x16x16xf32>
    %133 = vector.shape_cast %132 : vector<1x16x16xf32> to vector<16x16xf32>
    %134 = arith.mulf %133, %119 : vector<16x16xf32>
    %c1_93 = arith.constant 1 : index
    %c1_94 = arith.constant 1 : index
    %c0_95 = arith.constant 0 : index
    %c0_96 = arith.constant 0 : index
    %135 = vector.load %arg5[%c1_93, %c1_94, %c0_95, %c0_96] : memref<2x2x17x17xf32, #tpu.memory_space<vmem>>, vector<1x1x16x16xf32>
    %136 = vector.shape_cast %135 : vector<1x1x16x16xf32> to vector<16x16xf32>
    %137 = vector.shape_cast %134 : vector<16x16xf32> to vector<1x1x16x16xf32>
    tpu.vector_store %arg5[%c1_93, %c1_94, %c0_95, %c0_96], %137 {strides = array<i32>} : memref<2x2x17x17xf32, #tpu.memory_space<vmem>>, vector<1x1x16x16xf32>,
    %cst_97 = arith.constant 0.000000e+00 : f32
    %138 = vector.broadcast %cst_97 : f32 to vector<2x2x1x17xf32>
    %cst_98 = arith.constant 0.000000e+00 : f32
    %139 = vector.broadcast %cst_98 : f32 to vector<2x2x16x1xf32>
    %c0_99 = arith.constant 0 : index
    %c0_100 = arith.constant 0 : index
    %c16 = arith.constant 16 : index
    %c0_101 = arith.constant 0 : index
    %140 = vector.load %arg4[%c0_99, %c0_100, %c16, %c0_101] : memref<2x2x17x17xf32, #tpu.memory_space<vmem>>, vector<2x2x1x17xf32>
    tpu.vector_store %arg4[%c0_99, %c0_100, %c16, %c0_101], %138 {strides = array<i32>} : memref<2x2x17x17xf32, #tpu.memory_space<vmem>>, vector<2x2x1x17xf32>,
    %c0_102 = arith.constant 0 : index
    %c0_103 = arith.constant 0 : index
    %c0_104 = arith.constant 0 : index
    %c16_105 = arith.constant 16 : index
    %141 = vector.load %arg4[%c0_102, %c0_103, %c0_104, %c16_105] : memref<2x2x17x17xf32, #tpu.memory_space<vmem>>, vector<2x2x16x1xf32>
    tpu.vector_store %arg4[%c0_102, %c0_103, %c0_104, %c16_105], %139 {strides = array<i32>} : memref<2x2x17x17xf32, #tpu.memory_space<vmem>>, vector<2x2x16x1xf32>,
    %c0_106 = arith.constant 0 : index
    %c0_107 = arith.constant 0 : index
    %c16_108 = arith.constant 16 : index
    %c0_109 = arith.constant 0 : index
    %142 = vector.load %arg5[%c0_106, %c0_107, %c16_108, %c0_109] : memref<2x2x17x17xf32, #tpu.memory_space<vmem>>, vector<2x2x1x17xf32>
    tpu.vector_store %arg5[%c0_106, %c0_107, %c16_108, %c0_109], %138 {strides = array<i32>} : memref<2x2x17x17xf32, #tpu.memory_space<vmem>>, vector<2x2x1x17xf32>,
    %c0_110 = arith.constant 0 : index
    %c0_111 = arith.constant 0 : index
    %c0_112 = arith.constant 0 : index
    %c16_113 = arith.constant 16 : index
    %143 = vector.load %arg5[%c0_110, %c0_111, %c0_112, %c16_113] : memref<2x2x17x17xf32, #tpu.memory_space<vmem>>, vector<2x2x16x1xf32>
    tpu.vector_store %arg5[%c0_110, %c0_111, %c0_112, %c16_113], %139 {strides = array<i32>} : memref<2x2x17x17xf32, #tpu.memory_space<vmem>>, vector<2x2x16x1xf32>,
    return
  }
  func.func @transform_0(%arg0: i32) -> (i32, i32, i32, i32) {
    %c0_i32 = arith.constant 0 : i32
    %c0_i32_0 = arith.constant 0 : i32
    %c0_i32_1 = arith.constant 0 : i32
    %c0_i32_2 = arith.constant 0 : i32
    return %arg0, %c0_i32, %c0_i32_0, %c0_i32_1 : i32, i32, i32, i32
  }
  func.func @transform_1(%arg0: i32) -> (i32, i32) {
    %c0_i32 = arith.constant 0 : i32
    %c0_i32_0 = arith.constant 0 : i32
    return %arg0, %c0_i32 : i32, i32
  }
  func.func @transform_2(%arg0: i32) -> (i32, i32, i32, i32) {
    %c0_i32 = arith.constant 0 : i32
    %c0_i32_0 = arith.constant 0 : i32
    %c0_i32_1 = arith.constant 0 : i32
    %c0_i32_2 = arith.constant 0 : i32
    return %arg0, %c0_i32, %c0_i32_0, %c0_i32_1 : i32, i32, i32, i32
  }
  func.func @transform_3(%arg0: i32) -> (i32, i32, i32, i32) {
    %c0_i32 = arith.constant 0 : i32
    %c0_i32_0 = arith.constant 0 : i32
    %c0_i32_1 = arith.constant 0 : i32
    %c0_i32_2 = arith.constant 0 : i32
    return %arg0, %c0_i32, %c0_i32_0, %c0_i32_1 : i32, i32, i32, i32
  }
  func.func @transform_4(%arg0: i32) -> (i32, i32, i32, i32) {
    %c0_i32 = arith.constant 0 : i32
    %c0_i32_0 = arith.constant 0 : i32
    %c0_i32_1 = arith.constant 0 : i32
    %c0_i32_2 = arith.constant 0 : i32
    return %arg0, %c0_i32, %c0_i32_0, %c0_i32_1 : i32, i32, i32, i32
  }
}

</mosaic_0001>

<llo_original>
// kernel: tpu_custom_call.1
$region0: #{tpu_custom_call.1}
  #allocation0 [shape = 'u32[]', space=smem, size = 0x4, offset = 0x4, fixed_abs, tag = 'smem constant byte address 0x4 - core index']
  #allocation1 [shape = 'u32[144,128]{1,0:T(1,128)}', space=vmem, size = 0x12000, scoped, tag = 'internal scratch']
  %s0 = inlined_call_operand.hbm [shape: f32[2,4,16,16], index: 0, kind: input, shape index: {}]
  %s1 = inlined_call_operand.vmem [shape: f32[2,1], index: 1, kind: output, shape index: {0}]
  %s2 = inlined_call_operand.hbm [shape: f32[2,2,16,16], index: 2, kind: output, shape index: {1}]
  %s3 = inlined_call_operand.vmem [shape: f32[2,2,17,17], index: 3, kind: output, shape index: {2}]
  %s4 = inlined_call_operand.vmem [shape: f32[2,2,17,17], index: 4, kind: output, shape index: {3}]
  %5 = xla_tuple %s1, %s2, %s3, %s4
  %s6 = sld [smem:[#allocation0]]
  $region42: #{tpu_custom_call.1} parent=0
    _
  %s8 = ssub.s32 1, %s6
  %s9 = scalar_select 0, %s8, %s6
  $region1: #{tpu_custom_call.1} parent=0
    #allocation2 [shape = 'u8[65536]{0}', space=vmem, size = 0x10000, scoped, tag = 'input window, operand 0, single buffered']
    #allocation3 [shape = 's32[1]{0}', space=sflag, size = 0x4, scoped, tag = 'scoped memory for tpu_custom_call.1']
    #allocation4 [shape = 's32[1]{0}', space=sflag, size = 0x4, scoped, tag = 'scoped memory for tpu_custom_call.1']
    #allocation5 [shape = 's32[1]{0}', space=sflag, size = 0x4, scoped, tag = 'scoped memory for tpu_custom_call.1']
    #allocation6 [shape = 'u8[1024]{0}', space=smem, size = 0x400, scoped, tag = 'output window, operand 0, single buffered']
    #allocation7 [shape = 'u8[32768]{0}', space=vmem, size = 0x8000, scoped, tag = 'output window, operand 1, single buffered']
    %10 = vsyncpa [#allocation3], 0
    %11 = vsyncpa [#allocation5], 0
    %12 = vsyncpa [#allocation4], 0
    // Predicated region
    $region2: #{tpu_custom_call.1} parent=1 // pred_check
      _
    $region3: #{tpu_custom_call.1} parent=1 // pred_check_branch
      %14 = sbr.rel (0) target = $region5
    $region4: #{tpu_custom_call.1} parent=1 // pred_region
      %s16 = ssub.s32 2048, 2048
      %17 = vsyncadd [#allocation3], %s16
      %s18 = sshll.u32 [#allocation2], 4
      %s19 = int_to_ptr.vmem [resolvable:$true] %s18
      %24 = dma.hbm_to_vmem [thread:$0]  %s0, 2048, %s19, [#allocation3], 128, 128, 8
    $region5: #{tpu_custom_call.1} parent=1 // pred_fallthru
      _
    // Predicated region
    $region6: #{tpu_custom_call.1} parent=1 // pred_check
      _
    $region7: #{tpu_custom_call.1} parent=1 // pred_check_branch
      %26 = sbr.rel (0) target = $region9
    $region8: #{tpu_custom_call.1} parent=1 // pred_region
      %27 = dma.done [#allocation3], 2048
    $region9: #{tpu_custom_call.1} parent=1 // pred_fallthru
      _
    %v28 = vlaneseq
    %v29 = vand.u32 %v28, 127
    %vm30 = vcmp.ge.s32.totalorder %v29, 1
    %v31 = vsel %vm30, 1, 0
    %v32 = vcvt.s32.f32 %v31
    %v33 = vlaneseq
    %v34 = vshrl.u32 %v33, 7
    %v35 = vadd.s32 %v34, 8
    %vm36 = vcmp.ge.s32.totalorder %v34, 1
    %vm37 = vcmp.ge.s32.totalorder %v35, 1
    %v38 = vsel %vm36, 1, 0
    %v39 = vsel %vm37, 1, 0
    %v40 = vcvt.s32.f32 %v38
    %v41 = vcvt.s32.f32 %v39
    %v42 = vld [vmem:[#allocation2] sm:$0xff]
    %v43 = vld [vmem:[#allocation2 + $0x8] sm:$0xff]
    %s44 = scalar_lea.vmem [#allocation2], 16
    %v45 = vld [vmem:[%s44] sm:$0xff]
    %v46 = vld [vmem:[%s44 + $0x8] sm:$0xff]
    %v47 = vld [vmem:[%s44 + $0x10] sm:$0xff]
    %v48 = vld [vmem:[%s44 + $0x18] sm:$0xff]
    %s49 = scalar_lea.vmem [#allocation2], 48
    %v50 = vld [vmem:[%s49] sm:$0xff]
    %v51 = vld [vmem:[%s49 + $0x8] sm:$0xff]
    %vm52 = vcmask 130048
    %v53 = vsel %vm52, %v45, 0.0
    %v54 = vsel %vm52, %v46, 0.0
    %v55 = vadd.f32 %v53, %v54
    %v56 = vsel %vm52, %v47, 0.0
    %v57 = vadd.f32 %v55, %v56
    %v58 = vsel %vm52, %v48, 0.0
    %v59 = vadd.f32 %v57, %v58
    %60 = vadd.xlane.f32.xlu0 %v59
    %v61 = vpop.xlane.xlu0 %60
    %v62 = vrot.slane %v61, 4
    %v63 = vadd.f32 %v61, %v62
    %v64 = vrot.slane %v63, 2
    %v65 = vadd.f32 %v63, %v64
    %v66 = vrot.slane %v65, 1
    %v67 = vadd.f32 %v65, %v66
    %s68 = vtos %v67
    %v69 = vrcp.pop 512.0
    %s70 = vtos %v69
    %s71 = smul.f32 %s68, %s70
    %v72 = vstv %s71
    %v73 = vsub.f32 %v45, %v72
    %v74 = vsub.f32 %v46, %v72
    %v75 = vsub.f32 %v47, %v72
    %v76 = vsub.f32 %v48, %v72
    %v77 = vmul.f32 %v73, %v73
    %v78 = vmul.f32 %v74, %v74
    %v79 = vmul.f32 %v75, %v75
    %v80 = vmul.f32 %v76, %v76
    %v81 = vsel %vm52, %v77, 0.0
    %v82 = vsel %vm52, %v78, 0.0
    %v83 = vadd.f32 %v81, %v82
    %v84 = vsel %vm52, %v79, 0.0
    %v85 = vadd.f32 %v83, %v84
    %v86 = vsel %vm52, %v80, 0.0
    %v87 = vadd.f32 %v85, %v86
    %88 = vadd.xlane.f32.xlu0 %v87
    %v89 = vpop.xlane.xlu0 %88
    %v90 = vrot.slane %v89, 4
    %v91 = vadd.f32 %v89, %v90
    %v92 = vrot.slane %v91, 2
    %v93 = vadd.f32 %v91, %v92
    %v94 = vrot.slane %v93, 1
    %v95 = vadd.f32 %v93, %v94
    %s96 = vtos %v95
    %v97 = vrcp.pop 511.0
    %s98 = vtos %v97
    %s99 = smul.f32 %s96, %s98
    %v100 = vstv %s99
    %v101 = vrsqrt.pop %v100
    %v102 = vmul.f32 %v100, %v101
    %vm103 = vcmp.eq.f32.partialorder %v100, inf
    %v104 = vsel %vm103, %v100, %v102
    %vm105 = vcmp.eq.f32.partialorder %v100, 0.0
    %v106 = vand.u32 %v100, 2147483648
    %v107 = vsel %vm105, %v106, %v104
    %s108 = vtos %v107
    %s109 = smax.f32 %s108, 1e-05
    %s110 = scalar_lea.smem [#allocation6], 0
    %111 = sst [smem:[%s110]] %s109
    %v112 = vstv %s109
    %v113 = vrcp.pop %v112
    %s114 = vtos %v113
    %v115 = vstv %s114
    %v116 = vmul.f32 %v42, %v115
    %v117 = vmul.f32 %v43, %v115
    %118 = vst.msk [vmem:[#allocation7] sm:$0xff] %vm52, %v116
    %119 = vst.msk [vmem:[#allocation7 + $0x8] sm:$0xff] %vm52, %v117
    %vm120 = vcmp.eq.f32.partialorder %v50, 2.0
    %vm121 = vcmp.eq.f32.partialorder %v51, 2.0
    %v122 = vsel %vm120, 1.0, 0.0
    %v123 = vsel %vm121, 1.0, 0.0
    %s124 = scalar_lea.vmem [#allocation7], 16
    %125 = vst.msk [vmem:[%s124] sm:$0xff] %vm52, %v122
    %126 = vst.msk [vmem:[%s124 + $0x8] sm:$0xff] %vm52, %v123
    %v127 = vsub.f32 2.0, %v50
    %v128 = vsub.f32 2.0, %v51
    %vm129 = vcmask 1047680
    %130 = vrot.lane.b32.xlu0 %v127, 16
    %v131 = vpop.permute.xlu0 %130
    %v132 = vsel %vm129, %v131, %v127
    %133 = vrot.lane.b32.xlu0 %v128, 16
    %v134 = vpop.permute.xlu0 %133
    %v135 = vsel %vm129, %v134, %v128
    %136 = vrot.lane.b32.xlu0 %v132, 16
    %v137 = vpop.permute.xlu0 %136
    %138 = vrot.lane.b32.xlu0 %v135, 16
    %v139 = vpop.permute.xlu0 %138
    %v140 = vsel %vm129, %v137, %v127
    %v141 = vsel %vm129, %v139, %v128
    %143 = vrot.lane.b32.xlu0 %v32, 15
    %v144 = vpop.permute.xlu0 %143
    %v146 = vmul.f32 %v140, %v144
    %v147 = vmul.f32 %v141, %v144
    %v148 = vrot.slane %v127, 7
    %v149 = vrot.slane %v128, 7
    %vm150 = vcmp.lt.s32.totalorder %v34, 1
    %v151 = vsel %vm150, %v148, %v149
    %v152 = vsel %vm150, %v149, %v148
    %v153 = vmul.f32 %v152, %v40
    %v154 = vmul.f32 %v151, %v41
    %157 = vrot.lane.b32.xlu0 %v146, 113
    %v158 = vpop.permute.xlu0 %157
    %159 = vrot.lane.b32.xlu0 %v147, 113
    %v160 = vpop.permute.xlu0 %159
    %v163 = vmul.f32 %v127, %v158
    %v164 = vmul.f32 %v128, %v160
    %v165 = vmul.f32 %v127, %v153
    %v166 = vmul.f32 %v128, %v154
    %167 = vst.msk [vmem:[%s3] sm:$0xff] %vm52, %v163
    %168 = vst.msk [vmem:[%s3 + $0x8] sm:$0xff] %vm52, %v164
    %s169 = scalar_lea.vmem %s3, 24
    %170 = vst.msk [vmem:[%s169] sm:$0xff] %vm52, %v165
    %171 = vst.msk [vmem:[%s169 + $0x8] sm:$0xff] %vm52, %v166
    %v172 = vmul.f32 %v45, %v163
    %v173 = vmul.f32 %v46, %v164
    %174 = vst.msk [vmem:[%s4] sm:$0xff] %vm52, %v172
    %175 = vst.msk [vmem:[%s4 + $0x8] sm:$0xff] %vm52, %v173
    %v176 = vmul.f32 %v47, %v165
    %v177 = vmul.f32 %v48, %v166
    %s178 = scalar_lea.vmem %s4, 24
    %179 = vst.msk [vmem:[%s178] sm:$0xff] %vm52, %v176
    %180 = vst.msk [vmem:[%s178 + $0x8] sm:$0xff] %vm52, %v177
    %s181 = scalar_lea.vmem [#allocation2], 64
    %v182 = vld [vmem:[%s181] sm:$0xff]
    %v183 = vld [vmem:[%s181 + $0x8] sm:$0xff]
    %s184 = scalar_lea.vmem [#allocation2], 80
    %v185 = vld [vmem:[%s184] sm:$0xff]
    %v186 = vld [vmem:[%s184 + $0x8] sm:$0xff]
    %v187 = vld [vmem:[%s184 + $0x10] sm:$0xff]
    %v188 = vld [vmem:[%s184 + $0x18] sm:$0xff]
    %s189 = scalar_lea.vmem [#allocation2], 112
    %v190 = vld [vmem:[%s189] sm:$0xff]
    %v191 = vld [vmem:[%s189 + $0x8] sm:$0xff]
    %v192 = vsel %vm52, %v185, 0.0
    %v193 = vsel %vm52, %v186, 0.0
    %v194 = vadd.f32 %v192, %v193
    %v195 = vsel %vm52, %v187, 0.0
    %v196 = vadd.f32 %v194, %v195
    %v197 = vsel %vm52, %v188, 0.0
    %v198 = vadd.f32 %v196, %v197
    %199 = vadd.xlane.f32.xlu0 %v198
    %v200 = vpop.xlane.xlu0 %199
    %v201 = vrot.slane %v200, 4
    %v202 = vadd.f32 %v200, %v201
    %v203 = vrot.slane %v202, 2
    %v204 = vadd.f32 %v202, %v203
    %v205 = vrot.slane %v204, 1
    %v206 = vadd.f32 %v204, %v205
    %s207 = vtos %v206
    %v208 = vrcp.pop 512.0
    %s209 = vtos %v208
    %s210 = smul.f32 %s207, %s209
    %v211 = vstv %s210
    %v212 = vsub.f32 %v185, %v211
    %v213 = vsub.f32 %v186, %v211
    %v214 = vsub.f32 %v187, %v211
    %v215 = vsub.f32 %v188, %v211
    %v216 = vmul.f32 %v212, %v212
    %v217 = vmul.f32 %v213, %v213
    %v218 = vmul.f32 %v214, %v214
    %v219 = vmul.f32 %v215, %v215
    %v220 = vsel %vm52, %v216, 0.0
    %v221 = vsel %vm52, %v217, 0.0
    %v222 = vadd.f32 %v220, %v221
    %v223 = vsel %vm52, %v218, 0.0
    %v224 = vadd.f32 %v222, %v223
    %v225 = vsel %vm52, %v219, 0.0
    %v226 = vadd.f32 %v224, %v225
    %227 = vadd.xlane.f32.xlu0 %v226
    %v228 = vpop.xlane.xlu0 %227
    %v229 = vrot.slane %v228, 4
    %v230 = vadd.f32 %v228, %v229
    %v231 = vrot.slane %v230, 2
    %v232 = vadd.f32 %v230, %v231
    %v233 = vrot.slane %v232, 1
    %v234 = vadd.f32 %v232, %v233
    %s235 = vtos %v234
    %v236 = vrcp.pop 511.0
    %s237 = vtos %v236
    %s238 = smul.f32 %s235, %s237
    %v239 = vstv %s238
    %v240 = vrsqrt.pop %v239
    %v241 = vmul.f32 %v239, %v240
    %vm242 = vcmp.eq.f32.partialorder %v239, inf
    %v243 = vsel %vm242, %v239, %v241
    %vm244 = vcmp.eq.f32.partialorder %v239, 0.0
    %v245 = vand.u32 %v239, 2147483648
    %v246 = vsel %vm244, %v245, %v243
    %s247 = vtos %v246
    %s248 = smax.f32 %s247, 1e-05
    %s249 = scalar_lea.smem [#allocation6], 128
    %250 = sst [smem:[%s249]] %s248
    %v251 = vstv %s248
    %v252 = vrcp.pop %v251
    %s253 = vtos %v252
    %v254 = vstv %s253
    %v255 = vmul.f32 %v182, %v254
    %v256 = vmul.f32 %v183, %v254
    %s257 = scalar_lea.vmem [#allocation7], 32
    %258 = vst.msk [vmem:[%s257] sm:$0xff] %vm52, %v255
    %259 = vst.msk [vmem:[%s257 + $0x8] sm:$0xff] %vm52, %v256
    %vm260 = vcmp.eq.f32.partialorder %v190, 2.0
    %vm261 = vcmp.eq.f32.partialorder %v191, 2.0
    %v262 = vsel %vm260, 1.0, 0.0
    %v263 = vsel %vm261, 1.0, 0.0
    %s264 = scalar_lea.vmem [#allocation7], 48
    %265 = vst.msk [vmem:[%s264] sm:$0xff] %vm52, %v262
    %266 = vst.msk [vmem:[%s264 + $0x8] sm:$0xff] %vm52, %v263
    %v267 = vsub.f32 2.0, %v190
    %v268 = vsub.f32 2.0, %v191
    %269 = vrot.lane.b32.xlu0 %v267, 16
    %v270 = vpop.permute.xlu0 %269
    %v271 = vsel %vm129, %v270, %v267
    %272 = vrot.lane.b32.xlu0 %v268, 16
    %v273 = vpop.permute.xlu0 %272
    %v274 = vsel %vm129, %v273, %v268
    %275 = vrot.lane.b32.xlu0 %v271, 16
    %v276 = vpop.permute.xlu0 %275
    %277 = vrot.lane.b32.xlu0 %v274, 16
    %v278 = vpop.permute.xlu0 %277
    %v279 = vsel %vm129, %v276, %v267
    %v280 = vsel %vm129, %v278, %v268
    %v281 = vmul.f32 %v279, %v144
    %v282 = vmul.f32 %v280, %v144
    %v283 = vrot.slane %v267, 7
    %v284 = vrot.slane %v268, 7
    %v285 = vsel %vm150, %v283, %v284
    %v286 = vsel %vm150, %v284, %v283
    %v287 = vmul.f32 %v286, %v40
    %v288 = vmul.f32 %v285, %v41
    %291 = vrot.lane.b32.xlu0 %v281, 113
    %v292 = vpop.permute.xlu0 %291
    %293 = vrot.lane.b32.xlu0 %v282, 113
    %v294 = vpop.permute.xlu0 %293
    %v297 = vmul.f32 %v267, %v292
    %v298 = vmul.f32 %v268, %v294
    %v299 = vmul.f32 %v267, %v287
    %v300 = vmul.f32 %v268, %v288
    %s301 = scalar_lea.vmem %s3, 48
    %302 = vst.msk [vmem:[%s301] sm:$0xff] %vm52, %v297
    %303 = vst.msk [vmem:[%s301 + $0x8] sm:$0xff] %vm52, %v298
    %s304 = scalar_lea.vmem %s3, 72
    %305 = vst.msk [vmem:[%s304] sm:$0xff] %vm52, %v299
    %306 = vst.msk [vmem:[%s304 + $0x8] sm:$0xff] %vm52, %v300
    %v307 = vmul.f32 %v185, %v297
    %v308 = vmul.f32 %v186, %v298
    %s309 = scalar_lea.vmem %s4, 48
    %310 = vst.msk [vmem:[%s309] sm:$0xff] %vm52, %v307
    %311 = vst.msk [vmem:[%s309 + $0x8] sm:$0xff] %vm52, %v308
    %v312 = vmul.f32 %v187, %v299
    %v313 = vmul.f32 %v188, %v300
    %s314 = scalar_lea.vmem %s4, 72
    %315 = vst.msk [vmem:[%s314] sm:$0xff] %vm52, %v312
    %316 = vst.msk [vmem:[%s314 + $0x8] sm:$0xff] %vm52, %v313
    %vm317 = vcmask 131072
    %318 = vst.msk [vmem:[%s3 + $0x10] sm:$0x1] %vm317, 0.0
    %319 = vst.msk [vmem:[%s3 + $0x28] sm:$0x1] %vm317, 0.0
    %320 = vst.msk [vmem:[%s3 + $0x40] sm:$0x1] %vm317, 0.0
    %321 = vst.msk [vmem:[%s3 + $0x58] sm:$0x1] %vm317, 0.0
    %vm322 = vcmask 138368
    %323 = vst.msk [vmem:[%s3] sm:$0xff] %vm322, 0.0
    %324 = vst.msk [vmem:[%s3 + $0x8] sm:$0xff] %vm322, 0.0
    %325 = vst.msk [vmem:[%s3 + $0x18] sm:$0xff] %vm322, 0.0
    %326 = vst.msk [vmem:[%s3 + $0x20] sm:$0xff] %vm322, 0.0
    %327 = vst.msk [vmem:[%s3 + $0x30] sm:$0xff] %vm322, 0.0
    %328 = vst.msk [vmem:[%s3 + $0x38] sm:$0xff] %vm322, 0.0
    %329 = vst.msk [vmem:[%s3 + $0x48] sm:$0xff] %vm322, 0.0
    %330 = vst.msk [vmem:[%s3 + $0x50] sm:$0xff] %vm322, 0.0
    %331 = vst.msk [vmem:[%s4 + $0x10] sm:$0x1] %vm317, 0.0
    %332 = vst.msk [vmem:[%s4 + $0x28] sm:$0x1] %vm317, 0.0
    %333 = vst.msk [vmem:[%s4 + $0x40] sm:$0x1] %vm317, 0.0
    %334 = vst.msk [vmem:[%s4 + $0x58] sm:$0x1] %vm317, 0.0
    %335 = vst.msk [vmem:[%s4] sm:$0xff] %vm322, 0.0
    %336 = vst.msk [vmem:[%s4 + $0x8] sm:$0xff] %vm322, 0.0
    %337 = vst.msk [vmem:[%s4 + $0x18] sm:$0xff] %vm322, 0.0
    %338 = vst.msk [vmem:[%s4 + $0x20] sm:$0xff] %vm322, 0.0
    %339 = vst.msk [vmem:[%s4 + $0x30] sm:$0xff] %vm322, 0.0
    %340 = vst.msk [vmem:[%s4 + $0x38] sm:$0xff] %vm322, 0.0
    %341 = vst.msk [vmem:[%s4 + $0x48] sm:$0xff] %vm322, 0.0
    %342 = vst.msk [vmem:[%s4 + $0x50] sm:$0xff] %vm322, 0.0
    // Predicated region
    $region10: #{tpu_custom_call.1} parent=1 // pred_check
      _
    $region11: #{tpu_custom_call.1} parent=1 // pred_check_branch
      %344 = sbr.rel (0) target = $region13
    $region12: #{tpu_custom_call.1} parent=1 // pred_region
      %s346 = ssub.s32 32, 32
      %347 = vsyncadd [#allocation5], %s346
      %s349 = sshll.u32 %s1, 4
      %s350 = int_to_ptr.vmem [resolvable:$true] %s349
      %352 = dma.smem_to_vmem [#allocation6], 32, %s350, [#allocation5]
    $region13: #{tpu_custom_call.1} parent=1 // pred_fallthru
      _
    // Predicated region
    $region14: #{tpu_custom_call.1} parent=1 // pred_check
      _
    $region15: #{tpu_custom_call.1} parent=1 // pred_check_branch
      %354 = sbr.rel (0) target = $region17
    $region16: #{tpu_custom_call.1} parent=1 // pred_region
      %s356 = ssub.s32 1024, 1024
      %357 = vsyncadd [#allocation4], %s356
      %s358 = sshll.u32 [#allocation7], 4
      %s359 = int_to_ptr.vmem [resolvable:$true] %s358
      %364 = dma.vmem_to_hbm [thread:$0]  %s359, 1024, %s2, [#allocation4], 128, 128, 8
    $region17: #{tpu_custom_call.1} parent=1 // pred_fallthru
      _
    // Predicated region
    $region18: #{tpu_custom_call.1} parent=1 // pred_check
      _
    $region19: #{tpu_custom_call.1} parent=1 // pred_check_branch
      %366 = sbr.rel (0) target = $region21
    $region20: #{tpu_custom_call.1} parent=1 // pred_region
      _
    $region21: #{tpu_custom_call.1} parent=1 // pred_fallthru
      _
    // Predicated region
    $region22: #{tpu_custom_call.1} parent=1 // pred_check
      _
    $region23: #{tpu_custom_call.1} parent=1 // pred_check_branch
      %368 = sbr.rel (0) target = $region25
    $region24: #{tpu_custom_call.1} parent=1 // pred_region
      _
    $region25: #{tpu_custom_call.1} parent=1 // pred_fallthru
      _
    // Predicated region
    $region26: #{tpu_custom_call.1} parent=1 // pred_check
      _
    $region27: #{tpu_custom_call.1} parent=1 // pred_check_branch
      %370 = sbr.rel (0) target = $region29
    $region28: #{tpu_custom_call.1} parent=1 // pred_region
      %371 = dma.done [#allocation5], 32
    $region29: #{tpu_custom_call.1} parent=1 // pred_fallthru
      _
    // Predicated region
    $region30: #{tpu_custom_call.1} parent=1 // pred_check
      _
    $region31: #{tpu_custom_call.1} parent=1 // pred_check_branch
      %373 = sbr.rel (0) target = $region33
    $region32: #{tpu_custom_call.1} parent=1 // pred_region
      %374 = dma.done [#allocation4], 1024
    $region33: #{tpu_custom_call.1} parent=1 // pred_fallthru
      _
    // Predicated region
    $region34: #{tpu_custom_call.1} parent=1 // pred_check
      _
    $region35: #{tpu_custom_call.1} parent=1 // pred_check_branch
      %376 = sbr.rel (0) target = $region37
    $region36: #{tpu_custom_call.1} parent=1 // pred_region
      _
    $region37: #{tpu_custom_call.1} parent=1 // pred_fallthru
      _
    // Predicated region
    $region38: #{tpu_custom_call.1} parent=1 // pred_check
      _
    $region39: #{tpu_custom_call.1} parent=1 // pred_check_branch
      %378 = sbr.rel (0) target = $region41
    $region40: #{tpu_custom_call.1} parent=1 // pred_region
      _
    $region41: #{tpu_custom_call.1} parent=1 // pred_fallthru
      _
    %379 = sfence
    %380 = vsyncpa [#allocation3], 1
    %381 = vsyncpa [#allocation4], 1
    %382 = vsyncpa [#allocation5], 1

</llo_original>
